<compile_context>
chip_gen: v6e
topology: v6e:2x2x1
jax: 0.10.0
libtpu: 0.0.40
codegen_flags: <defaults>
</compile_context>

<pallas_src>
import functools

import jax
import jax.numpy as jnp
import numpy as np
from jax import lax
from jax.experimental import pallas as pl
from jax.experimental.pallas import tpu as pltpu


def _round_up(x, m):
    return ((x + m - 1) // m) * m


def _detect_vmem_bytes():
    # Generation-aware VMEM: 128 MiB physical on v5e/v6e, 64 MiB on v7x.
    try:
        info = pltpu.get_tpu_info()
        v = int(getattr(info, "vmem_capacity_bytes", 0) or 0)
        if v > 0:
            return v
    except Exception:
        pass
    return 64 * 1024 * 1024  # conservative (v7x physical)


_VMEM_PHYS = _detect_vmem_bytes()
# ~48 MiB usable on v7x, ~96 MiB on v5e/v6e, per the review.
_VMEM_LIMIT = min((_VMEM_PHYS * 3) // 4, 100 * 1024 * 1024)
_TILE_BUDGET = _VMEM_LIMIT // 2  # headroom for double-buffered blocks


def _pick_row_tiling(n, bytes_per_row):
    """Return (n_pad, tile), tile | n_pad.

    Small jobs (under ~2 MiB) get a single block / single grid step: per-step
    overhead (~0.35 us) dominates and splitting buys nothing, even on v7x.
    Larger jobs get a power-of-two, multiple-of-8 tile (>=2 grid steps) with
    rows padded up, so VMEM stays bounded for awkward N."""
    cap = max(8, _TILE_BUDGET // max(1, 4 * bytes_per_row))
    if n <= cap and n * bytes_per_row < (2 << 20):
        return n, n
    limit = min(cap, 2048, max(8, n // 2))
    tile = 8
    while tile * 2 <= limit:
        tile *= 2
    return _round_up(n, tile), tile


def _pick_hw_tiling(hw, bytes_per_col):
    """Return (hw_pad, tile) for the channel-major H*W (lane) axis.

    A single full block when it fits the budget; otherwise a multiple-of-128
    tile (a divisor of hw if one exists, else hw is padded up)."""
    cap = max(128, _TILE_BUDGET // max(1, 4 * bytes_per_col))
    if hw <= cap:
        return hw, hw
    cap128 = max(128, (cap // 128) * 128)
    t = cap128
    while t >= 128:
        if hw % t == 0:
            return hw, t
        t -= 128
    return _round_up(hw, cap128), cap128


# ---------------------------------------------------------------------------
# Pallas kernels
# ---------------------------------------------------------------------------
def _mlp_l2_rows_kernel(x_ref, w1_ref, b1_ref, w2_ref, b2_ref, o_ref):
    # Sampled path: out = l2norm_rows(relu(x @ w1 + b1) @ w2 + b2), fused,
    # written at width nc (no pad, no wrapper slice).
    x = x_ref[...].astype(jnp.float32)
    h = jnp.maximum(
        jnp.dot(x, w1_ref[...], preferred_element_type=jnp.float32) + b1_ref[...], 0.0)
    y = jnp.dot(h, w2_ref[...], preferred_element_type=jnp.float32) + b2_ref[...]
    inv = 1.0 / (jnp.sqrt(jnp.sum(y * y, axis=1, keepdims=True)) + 1e-7)
    o_ref[...] = (y * inv).astype(o_ref.dtype)


def _l2_rows_kernel(x_ref, o_ref):
    # Row-wise L2 norm (used only for large no-MLP sampled jobs).
    x = x_ref[...].astype(jnp.float32)
    inv = 1.0 / (jnp.sqrt(jnp.sum(x * x, axis=1, keepdims=True)) + 1e-7)
    o_ref[...] = (x * inv).astype(o_ref.dtype)


def _mlp_ssq_kernel(x_ref, w1t_ref, b1_ref, w2t_ref, b2_ref, y_ref, inv_ref,
                    acc_ref, *, hw_valid, hw_tile, masked):
    # Full path pass-1, channel-major: y[:, p] = MLP(x[:, p]) with H*W on the
    # lane axis; write y and accumulate sum(y^2) over H*W per channel; emit
    # 1/(||y||_2 + 1e-7) on the last H*W step.
    h = pl.program_id(1)

    @pl.when(h == 0)
    def _():
        acc_ref[...] = jnp.zeros_like(acc_ref)

    x = x_ref[0].astype(jnp.float32)                                   # (C, hw)
    hid = jnp.maximum(
        jnp.dot(w1t_ref[...], x, preferred_element_type=jnp.float32) + b1_ref[...], 0.0)
    y = jnp.dot(w2t_ref[...], hid, preferred_element_type=jnp.float32) + b2_ref[...]
    if masked:  # zero padded H*W columns so they never pollute the norm
        col = h * hw_tile + lax.broadcasted_iota(jnp.int32, y.shape, 1)
        y = jnp.where(col < hw_valid, y, 0.0)
    y_ref[0] = y.astype(y_ref.dtype)
    acc_ref[...] += jnp.sum(y * y, axis=-1, keepdims=True)             # (nc, 1)

    @pl.when(h == pl.num_programs(1) - 1)
    def _():
        inv_ref[0] = 1.0 / (jnp.sqrt(acc_ref[...]) + 1e-7)


def _ssq_kernel(x_ref, inv_ref, acc_ref):
    # Full path pass-1 (no MLP): accumulate sum(x^2) over H*W per channel.
    h = pl.program_id(1)

    @pl.when(h == 0)
    def _():
        acc_ref[...] = jnp.zeros_like(acc_ref)

    x = x_ref[0].astype(jnp.float32)                                   # (C, hw)
    acc_ref[...] += jnp.sum(x * x, axis=-1, keepdims=True)

    @pl.when(h == pl.num_programs(1) - 1)
    def _():
        inv_ref[0] = 1.0 / (jnp.sqrt(acc_ref[...]) + 1e-7)


def _scale_kernel(y_ref, inv_ref, o_ref):
    # Full path pass-2: scale channel-major blocks; output is already the final
    # (B, Cp, H*W) layout (no trailing XLA transpose).
    o_ref[...] = (y_ref[...].astype(jnp.float32) * inv_ref[...]).astype(o_ref.dtype)


# ---------------------------------------------------------------------------
# pallas_call wrappers
# ---------------------------------------------------------------------------
def _mlp_l2_rows_call(x, w1, b1, w2, b2):
    n, c_in = x.shape
    nc = w1.shape[1]
    n_pad, tile = _pick_row_tiling(n, 4 * (c_in + 2 * nc))
    if n_pad != n:
        x = jnp.pad(x, ((0, n_pad - n), (0, 0)))
    # TODO(synk): single-buffer the grid-invariant weight blocks with
    # pipeline_mode=pl.Buffered(1) once that knob matters; it only frees a few
    # tens of KiB of VMEM at these sizes.
    y = pl.pallas_call(
        _mlp_l2_rows_kernel,
        out_shape=jax.ShapeDtypeStruct((n_pad, nc), x.dtype),
        grid=(n_pad // tile,),
        in_specs=[
            pl.BlockSpec((tile, c_in), lambda i: (i, 0)),
            pl.BlockSpec((c_in, nc), lambda i: (0, 0)),
            pl.BlockSpec((1, nc), lambda i: (0, 0)),
            pl.BlockSpec((nc, nc), lambda i: (0, 0)),
            pl.BlockSpec((1, nc), lambda i: (0, 0)),
        ],
        out_specs=pl.BlockSpec((tile, nc), lambda i: (i, 0)),
        compiler_params=pltpu.CompilerParams(
            dimension_semantics=("parallel",), vmem_limit_bytes=_VMEM_LIMIT),
    )(x, w1, b1, w2, b2)
    return y[:n] if n_pad != n else y


def l2norm_rows_pallas(x):
    n, d = x.shape
    n_pad, tile = _pick_row_tiling(n, 4 * 2 * d)
    if n_pad != n:
        x = jnp.pad(x, ((0, n_pad - n), (0, 0)))
    y = pl.pallas_call(
        _l2_rows_kernel,
        out_shape=jax.ShapeDtypeStruct((n_pad, d), x.dtype),
        grid=(n_pad // tile,),
        in_specs=[pl.BlockSpec((tile, d), lambda i: (i, 0))],
        out_specs=pl.BlockSpec((tile, d), lambda i: (i, 0)),
        compiler_params=pltpu.CompilerParams(
            dimension_semantics=("parallel",), vmem_limit_bytes=_VMEM_LIMIT),
    )(x)
    return y[:n] if n_pad != n else y


def _mlp_ssq_call(x_cm, w1t, b1c, w2t, b2c):
    """x_cm: (B, C, HW) channel-major -> (y (B,nc,HW_pad), inv (B,nc,1), hw_tile)."""
    B, C, HW = x_cm.shape
    nc = w1t.shape[0]
    hw_pad, hw_tile = _pick_hw_tiling(HW, 4 * (C + 2 * nc))
    if hw_pad != HW:
        x_cm = jnp.pad(x_cm, ((0, 0), (0, 0), (0, hw_pad - HW)))
    kernel = functools.partial(_mlp_ssq_kernel, hw_valid=HW, hw_tile=hw_tile,
                               masked=(hw_pad != HW))
    y, inv = pl.pallas_call(
        kernel,
        out_shape=(jax.ShapeDtypeStruct((B, nc, hw_pad), x_cm.dtype),
                   jax.ShapeDtypeStruct((B, nc, 1), jnp.float32)),
        grid=(B, hw_pad // hw_tile),
        in_specs=[
            pl.BlockSpec((1, C, hw_tile), lambda b, h: (b, 0, h)),
            pl.BlockSpec((nc, C), lambda b, h: (0, 0)),
            pl.BlockSpec((nc, 1), lambda b, h: (0, 0)),
            pl.BlockSpec((nc, nc), lambda b, h: (0, 0)),
            pl.BlockSpec((nc, 1), lambda b, h: (0, 0)),
        ],
        out_specs=(pl.BlockSpec((1, nc, hw_tile), lambda b, h: (b, 0, h)),
                   pl.BlockSpec((1, nc, 1), lambda b, h: (b, 0, 0))),
        scratch_shapes=[pltpu.VMEM((nc, 1), jnp.float32)],
        compiler_params=pltpu.CompilerParams(
            dimension_semantics=("parallel", "arbitrary"),
            vmem_limit_bytes=_VMEM_LIMIT),
    )(x_cm, w1t, b1c, w2t, b2c)
    return y, inv, hw_tile


def _ssq_call(x_cm):
    """x_cm: (B, C, HW) -> (x_padded, inv (B,C,1), hw_tile)."""
    B, C, HW = x_cm.shape
    hw_pad, hw_tile = _pick_hw_tiling(HW, 4 * 2 * C)
    if hw_pad != HW:
        x_cm = jnp.pad(x_cm, ((0, 0), (0, 0), (0, hw_pad - HW)))
    inv = pl.pallas_call(
        _ssq_kernel,
        out_shape=jax.ShapeDtypeStruct((B, C, 1), jnp.float32),
        grid=(B, hw_pad // hw_tile),
        in_specs=[pl.BlockSpec((1, C, hw_tile), lambda b, h: (b, 0, h))],
        out_specs=pl.BlockSpec((1, C, 1), lambda b, h: (b, 0, 0)),
        scratch_shapes=[pltpu.VMEM((C, 1), jnp.float32)],
        compiler_params=pltpu.CompilerParams(
            dimension_semantics=("parallel", "arbitrary"),
            vmem_limit_bytes=_VMEM_LIMIT),
    )(x_cm)
    return x_cm, inv, hw_tile


def _scale_call(y, inv, hw_tile):
    B, Cp, HWp = y.shape
    return pl.pallas_call(
        _scale_kernel,
        out_shape=jax.ShapeDtypeStruct((B, Cp, HWp), y.dtype),
        grid=(B, HWp // hw_tile),
        in_specs=[pl.BlockSpec((1, Cp, hw_tile), lambda b, h: (b, 0, h)),
                  pl.BlockSpec((1, Cp, 1), lambda b, h: (b, 0, 0))],
        out_specs=pl.BlockSpec((1, Cp, hw_tile), lambda b, h: (b, 0, h)),
        compiler_params=pltpu.CompilerParams(
            dimension_semantics=("parallel", "parallel"),
            vmem_limit_bytes=_VMEM_LIMIT),
    )(y, inv)


# ---------------------------------------------------------------------------
# jitted per-feature-level forward paths
# ---------------------------------------------------------------------------
@functools.partial(jax.jit, static_argnames=("use_mlp",))
def _sample_level(feat, patch_id, params, *, use_mlp):
    B, C, H, W = feat.shape
    # Gather BEFORE transposing: only B*C*P elements are moved / transposed.
    xs = jnp.take(feat.reshape(B, C, H * W), patch_id, axis=2)      # (B, C, P)
    xs = jnp.transpose(xs, (0, 2, 1)).reshape(-1, C)                # (B*P, C)
    if use_mlp:
        w1, b1, w2, b2 = params[:4]
        return _mlp_l2_rows_call(xs, w1, b1, w2, b2)
    # Tiny no-MLP sampled job: launch overhead dominates a Pallas call, so the
    # normalization is fused into XLA; use the Pallas row-L2 kernel only when
    # the job is large enough to amortize launch + DMA setup.
    if xs.shape[0] * xs.shape[1] >= (1 << 18):
        return l2norm_rows_pallas(xs)
    x32 = xs.astype(jnp.float32)
    inv = 1.0 / (jnp.sqrt(jnp.sum(x32 * x32, axis=1, keepdims=True)) + 1e-7)
    return (x32 * inv).astype(feat.dtype)


@functools.partial(jax.jit, static_argnames=("use_mlp",))
def _full_level(feat, params, *, use_mlp):
    B, C, H, W = feat.shape
    x_cm = feat.reshape(B, C, H * W)          # channel-major; no transpose pass
    if use_mlp:
        w1t, b1c, w2t, b2c = params[4:]
        y, inv, hw_tile = _mlp_ssq_call(x_cm, w1t, b1c, w2t, b2c)
    else:
        y, inv, hw_tile = _ssq_call(x_cm)
    out = _scale_call(y, inv, hw_tile)        # (B, Cp, HW_pad), final layout
    if out.shape[-1] != H * W:
        out = out[:, :, : H * W]
    return out.reshape(B, out.shape[1], H, W)


# ---------------------------------------------------------------------------
# PatchSampler (JAX wrapper mirroring the PyTorch module)
# ---------------------------------------------------------------------------
class PatchSampler:
    def __init__(self, use_mlp=False, init_gain=0.02, nc=32):
        self.use_mlp = use_mlp
        self.nc = nc
        self.init_gain = init_gain
        self.mlps = None

    def create_mlp(self, channels, key):
        # init_weights 'normal': weight ~ N(0, init_gain), bias = 0.  Both the
        # row-major (sampled path: x @ W) and transposed/channel-major copies
        # (full path: W^T @ x_cols) are stored so neither path re-transposes
        # at call time.
        mlps = []
        for ch in channels:
            key, k1, k2 = jax.random.split(key, 3)
            w1 = jax.random.normal(k1, (ch, self.nc), jnp.float32) * self.init_gain
            w2 = jax.random.normal(k2, (self.nc, self.nc), jnp.float32) * self.init_gain
            b1 = jnp.zeros((1, self.nc), jnp.float32)
            b2 = jnp.zeros((1, self.nc), jnp.float32)
            b1c = jnp.zeros((self.nc, 1), jnp.float32)
            b2c = jnp.zeros((self.nc, 1), jnp.float32)
            mlps.append((w1, b1, w2, b2, w1.T, b1c, w2.T, b2c))
        self.mlps = mlps

    def __call__(self, feats, num_patches=64, patch_ids=None, key=None):
        return_ids = []
        return_feats = []
        for feat_id, feat in enumerate(feats):
            B, C, H, W = feat.shape
            params = self.mlps[feat_id] if self.use_mlp else ()
            if num_patches > 0:
                if patch_ids is not None:
                    patch_id = jnp.asarray(patch_ids[feat_id])
                else:
                    key, sub = jax.random.split(key)
                    patch_id = jax.random.permutation(sub, H * W)
                    patch_id = patch_id[: int(min(num_patches, H * W))]
                x_sample = _sample_level(feat, patch_id, params, use_mlp=self.use_mlp)
            else:
                patch_id = []
                x_sample = _full_level(feat, params, use_mlp=self.use_mlp)
            return_ids.append(patch_id)
            return_feats.append(x_sample)
        return return_feats, return_ids


# ---------------------------------------------------------------------------
# Pure-JAX references for verification
# ---------------------------------------------------------------------------
def reference_sample(feats, mlps, use_mlp, patch_ids):
    outs = []
    for fid, feat in enumerate(feats):
        B, C, H, W = feat.shape
        fr = jnp.transpose(feat, (0, 2, 3, 1)).reshape(B, H * W, C)
        xs = fr[:, patch_ids[fid], :].reshape(-1, C)
        if use_mlp:
            w1, b1, w2, b2 = mlps[fid][:4]
            xs = jnp.maximum(xs @ w1 + b1, 0.0) @ w2 + b2
        norm = jnp.sqrt(jnp.sum(xs * xs, axis=1, keepdims=True))
        outs.append(xs / (norm + 1e-7))
    return outs


def reference_full(feats, mlps, use_mlp):
    outs = []
    for fid, feat in enumerate(feats):
        B, C, H, W = feat.shape
        fr = jnp.transpose(feat, (0, 2, 3, 1)).reshape(B, H * W, C)
        if use_mlp:
            w1, b1, w2, b2 = mlps[fid][:4]
            fr = jnp.maximum(fr @ w1 + b1, 0.0) @ w2 + b2
        norm = jnp.sqrt(jnp.sum(fr * fr, axis=1, keepdims=True))   # over H*W
        out = fr / (norm + 1e-7)
        outs.append(jnp.transpose(out, (0, 2, 1)).reshape(B, out.shape[-1], H, W))
    return outs


# ---------------------------------------------------------------------------
if __name__ == "__main__":
    key = jax.random.PRNGKey(0)
    k_feat0, k_feat1, k_mlp, k_ids, k_rows = jax.random.split(key, 5)

    feats = [
        jax.random.normal(k_feat0, (2, 4, 16, 16), jnp.float32),
        jax.random.normal(k_feat1, (2, 8, 8, 8), jnp.float32),
    ]

    sampler = PatchSampler(use_mlp=True, init_gain=0.02, nc=32)
    sampler.create_mlp([f.shape[1] for f in feats], k_mlp)

    # Path 1: num_patches > 0, use_mlp=True — fused gather-side MLP + L2 kernel.
    out_feats, out_ids = sampler(feats, num_patches=64, patch_ids=None, key=k_ids)
    out_feats = [jax.block_until_ready(f) for f in out_feats]
    ref = reference_sample(feats, sampler.mlps, True, out_ids)
    for got, want in zip(out_feats, ref):
        assert got.shape == want.shape, (got.shape, want.shape)
        np.testing.assert_allclose(np.asarray(got), np.asarray(want),
                                   rtol=1e-5, atol=1e-5)

    # Path 2: num_patches == 0, use_mlp=True — channel-major fused MLP+ssq, then scale.
    full_feats, _ = sampler(feats, num_patches=0)
    full_feats = [jax.block_until_ready(f) for f in full_feats]
    ref_full = reference_full(feats, sampler.mlps, True)
    for got, want in zip(full_feats, ref_full):
        assert got.shape == want.shape, (got.shape, want.shape)
        np.testing.assert_allclose(np.asarray(got), np.asarray(want),
                                   rtol=1e-4, atol=1e-5)

    # Path 3: num_patches > 0, no MLP — tiny job, XLA-fused normalization path.
    plain = PatchSampler(use_mlp=False)
    out2, _ = plain(feats, num_patches=64, patch_ids=out_ids)
    out2 = [jax.block_until_ready(f) for f in out2]
    ref2 = reference_sample(feats, None, False, out_ids)
    for got, want in zip(out2, ref2):
        assert got.shape == want.shape, (got.shape, want.shape)
        np.testing.assert_allclose(np.asarray(got), np.asarray(want),
                                   rtol=1e-5, atol=1e-5)

    # Path 4: num_patches == 0, no MLP — channel-major ssq + scale kernels.
    full2, _ = plain(feats, num_patches=0)
    full2 = [jax.block_until_ready(f) for f in full2]
    ref_full2 = reference_full(feats, None, False)
    for got, want in zip(full2, ref_full2):
        assert got.shape == want.shape, (got.shape, want.shape)
        np.testing.assert_allclose(np.asarray(got), np.asarray(want),
                                   rtol=1e-5, atol=1e-5)

    # Path 5: standalone row-L2 Pallas kernel (used for large no-MLP sampled jobs).
    big = jax.random.normal(k_rows, (2048, 128), jnp.float32)
    got = jax.block_until_ready(l2norm_rows_pallas(big))
    want = big / (jnp.sqrt(jnp.sum(big * big, axis=1, keepdims=True)) + 1e-7)
    np.testing.assert_allclose(np.asarray(got), np.asarray(want),
                               rtol=1e-5, atol=1e-6)

    print("KERNEL_OK")
</pallas_src>

<mosaic_0001>
module attributes {stable_mosaic.version = 11 : i64} {
  func.func @_mlp_l2_rows_kernel(%arg0: i32, %arg1: memref<128x4xf32, #tpu.memory_space<vmem>>, %arg2: memref<4x32xf32, #tpu.memory_space<vmem>>, %arg3: memref<1x32xf32, #tpu.memory_space<vmem>>, %arg4: memref<32x32xf32, #tpu.memory_space<vmem>>, %arg5: memref<1x32xf32, #tpu.memory_space<vmem>>, %arg6: memref<128x32xf32, #tpu.memory_space<vmem>>) attributes {dimension_semantics = [#tpu.dimension_semantics<parallel>], iteration_bounds = array<i64: 1>, scalar_prefetch = 0 : i64, scratch_operands = 0 : i64, tpu.core_type = #tpu.core_type<tc>, window_params = [{transform_indices = @transform_0, window_bounds = array<i64: 128, 4>}, {pipeline_mode = #tpu.pipeline_mode<synchronous>, transform_indices = @transform_1, window_bounds = array<i64: 4, 32>}, {pipeline_mode = #tpu.pipeline_mode<synchronous>, transform_indices = @transform_2, window_bounds = array<i64: 1, 32>}, {pipeline_mode = #tpu.pipeline_mode<synchronous>, transform_indices = @transform_3, window_bounds = array<i64: 32, 32>}, {pipeline_mode = #tpu.pipeline_mode<synchronous>, transform_indices = @transform_4, window_bounds = array<i64: 1, 32>}, {transform_indices = @transform_5, window_bounds = array<i64: 128, 32>}]} {
    %c0 = arith.constant 0 : index
    %c0_0 = arith.constant 0 : index
    %0 = vector.load %arg1[%c0, %c0_0] : memref<128x4xf32, #tpu.memory_space<vmem>>, vector<128x4xf32>
    %c0_1 = arith.constant 0 : index
    %c0_2 = arith.constant 0 : index
    %1 = vector.load %arg2[%c0_1, %c0_2] : memref<4x32xf32, #tpu.memory_space<vmem>>, vector<4x32xf32>
    %cst = arith.constant dense<0.000000e+00> : vector<128x32xf32>
    %2 = tpu.matmul %0, %1, %cst {dimension_numbers = #tpu.dot_dimension_numbers<[1], [0], [0], [1], [0, 0, 1, 1], [], []>} : vector<128x4xf32>, vector<4x32xf32>, vector<128x32xf32> -> vector<128x32xf32>
    %c0_3 = arith.constant 0 : index
    %c0_4 = arith.constant 0 : index
    %3 = vector.load %arg3[%c0_3, %c0_4] : memref<1x32xf32, #tpu.memory_space<vmem>>, vector<1x32xf32>
    %4 = vector.broadcast %3 : vector<1x32xf32> to vector<128x32xf32>
    %5 = arith.addf %2, %4 : vector<128x32xf32>
    %cst_5 = arith.constant 0.000000e+00 : f32
    %6 = vector.broadcast %cst_5 : f32 to vector<128x32xf32>
    %7 = arith.maximumf %5, %6 : vector<128x32xf32>
    %c0_6 = arith.constant 0 : index
    %c0_7 = arith.constant 0 : index
    %8 = vector.load %arg4[%c0_6, %c0_7] : memref<32x32xf32, #tpu.memory_space<vmem>>, vector<32x32xf32>
    %cst_8 = arith.constant dense<0.000000e+00> : vector<128x32xf32>
    %9 = tpu.matmul %7, %8, %cst_8 {dimension_numbers = #tpu.dot_dimension_numbers<[1], [0], [0], [1], [0, 0, 1, 1], [], []>} : vector<128x32xf32>, vector<32x32xf32>, vector<128x32xf32> -> vector<128x32xf32>
    %c0_9 = arith.constant 0 : index
    %c0_10 = arith.constant 0 : index
    %10 = vector.load %arg5[%c0_9, %c0_10] : memref<1x32xf32, #tpu.memory_space<vmem>>, vector<1x32xf32>
    %11 = vector.broadcast %10 : vector<1x32xf32> to vector<128x32xf32>
    %12 = arith.addf %9, %11 : vector<128x32xf32>
    %13 = arith.mulf %12, %12 : vector<128x32xf32>
    %cst_11 = arith.constant dense<0.000000e+00> : vector<128xf32>
    %14 = vector.multi_reduction <add>, %13, %cst_11 [1] : vector<128x32xf32> to vector<128xf32>
    %15 = vector.shape_cast %14 : vector<128xf32> to vector<128x1xf32>
    %16 = math.sqrt %15 : vector<128x1xf32>
    %cst_12 = arith.constant 1.000000e-07 : f32
    %17 = vector.broadcast %cst_12 : f32 to vector<128x1xf32>
    %18 = arith.addf %16, %17 : vector<128x1xf32>
    %cst_13 = arith.constant 1.000000e+00 : f32
    %19 = vector.broadcast %cst_13 : f32 to vector<128x1xf32>
    %20 = arith.divf %19, %18 : vector<128x1xf32>
    %21 = vector.broadcast %20 : vector<128x1xf32> to vector<128x32xf32>
    %22 = arith.mulf %12, %21 : vector<128x32xf32>
    %c0_14 = arith.constant 0 : index
    %c0_15 = arith.constant 0 : index
    %23 = vector.load %arg6[%c0_14, %c0_15] : memref<128x32xf32, #tpu.memory_space<vmem>>, vector<128x32xf32>
    tpu.vector_store %arg6[%c0_14, %c0_15], %22 {strides = array<i32>} : memref<128x32xf32, #tpu.memory_space<vmem>>, vector<128x32xf32>,
    return
  }
  func.func @transform_0(%arg0: i32) -> (i32, i32) {
    %c0_i32 = arith.constant 0 : i32
    %c0_i32_0 = arith.constant 0 : i32
    return %arg0, %c0_i32 : i32, i32
  }
  func.func @transform_1(%arg0: i32) -> (i32, i32) {
    %c0_i32 = arith.constant 0 : i32
    %c0_i32_0 = arith.constant 0 : i32
    %c0_i32_1 = arith.constant 0 : i32
    return %c0_i32, %c0_i32_0 : i32, i32
  }
  func.func @transform_2(%arg0: i32) -> (i32, i32) {
    %c0_i32 = arith.constant 0 : i32
    %c0_i32_0 = arith.constant 0 : i32
    %c0_i32_1 = arith.constant 0 : i32
    return %c0_i32, %c0_i32_0 : i32, i32
  }
  func.func @transform_3(%arg0: i32) -> (i32, i32) {
    %c0_i32 = arith.constant 0 : i32
    %c0_i32_0 = arith.constant 0 : i32
    %c0_i32_1 = arith.constant 0 : i32
    return %c0_i32, %c0_i32_0 : i32, i32
  }
  func.func @transform_4(%arg0: i32) -> (i32, i32) {
    %c0_i32 = arith.constant 0 : i32
    %c0_i32_0 = arith.constant 0 : i32
    %c0_i32_1 = arith.constant 0 : i32
    return %c0_i32, %c0_i32_0 : i32, i32
  }
  func.func @transform_5(%arg0: i32) -> (i32, i32) {
    %c0_i32 = arith.constant 0 : i32
    %c0_i32_0 = arith.constant 0 : i32
    return %arg0, %c0_i32 : i32, i32
  }
}

</mosaic_0001>

<llo_original>
// kernel: _sample_level.1
$region0: #{_sample_level.1}
  #allocation0 [shape = 'u32[]', space=smem, size = 0x4, offset = 0x4, fixed_abs, tag = 'smem constant byte address 0x4 - core index']
  #allocation1 [shape = 'u32[144,128]{1,0:T(1,128)}', space=vmem, size = 0x12000, scoped, tag = 'internal scratch']
  %s0 = inlined_call_operand.vmem [shape: f32[128,4], index: 0, kind: input, shape index: {}]
  %s1 = inlined_call_operand.vmem [shape: f32[4,32], index: 1, kind: input, shape index: {}]
  %s2 = inlined_call_operand.vmem [shape: f32[1,32], index: 2, kind: input, shape index: {}]
  %s3 = inlined_call_operand.vmem [shape: f32[32,32], index: 3, kind: input, shape index: {}]
  %s4 = inlined_call_operand.vmem [shape: f32[1,32], index: 4, kind: input, shape index: {}]
  %s5 = inlined_call_operand.vmem [shape: f32[128,32], index: 5, kind: output, shape index: {}]
  %s6 = sld [smem:[#allocation0]]
  $region30: #{_sample_level.1} parent=0
    _
  %s8 = ssub.s32 1, %s6
  %s9 = scalar_select 0, %s8, %s6
  // Predicated region
  $region2: #{_sample_level.1} parent=0 // pred_check
    _
  $region3: #{_sample_level.1} parent=0 // pred_check_branch
    %11 = sbr.rel (0) target = $region5
  $region4: #{_sample_level.1} parent=0 // pred_region
    _
  $region5: #{_sample_level.1} parent=0 // pred_fallthru
    _
  // Predicated region
  $region6: #{_sample_level.1} parent=0 // pred_check
    _
  $region7: #{_sample_level.1} parent=0 // pred_check_branch
    %13 = sbr.rel (0) target = $region9
  $region8: #{_sample_level.1} parent=0 // pred_region
    _
  $region9: #{_sample_level.1} parent=0 // pred_fallthru
    _
  // Predicated region
  $region10: #{_sample_level.1} parent=0 // pred_check
    _
  $region11: #{_sample_level.1} parent=0 // pred_check_branch
    %15 = sbr.rel (0) target = $region13
  $region12: #{_sample_level.1} parent=0 // pred_region
    _
  $region13: #{_sample_level.1} parent=0 // pred_fallthru
    _
  // Predicated region
  $region14: #{_sample_level.1} parent=0 // pred_check
    _
  $region15: #{_sample_level.1} parent=0 // pred_check_branch
    %17 = sbr.rel (0) target = $region17
  $region16: #{_sample_level.1} parent=0 // pred_region
    _
  $region17: #{_sample_level.1} parent=0 // pred_fallthru
    _
  // Predicated region
  $region18: #{_sample_level.1} parent=0 // pred_check
    _
  $region19: #{_sample_level.1} parent=0 // pred_check_branch
    %19 = sbr.rel (0) target = $region21
  $region20: #{_sample_level.1} parent=0 // pred_region
    _
  $region21: #{_sample_level.1} parent=0 // pred_fallthru
    _
  %v20 = vld [vmem:[%s0] sm:$0xff]
  %v21 = vld [vmem:[%s0 + $0x8] sm:$0xff]
  %v22 = vld [vmem:[%s0 + $0x10] sm:$0xff]
  %v23 = vld [vmem:[%s0 + $0x18] sm:$0xff]
  %v24 = vld [vmem:[%s0 + $0x20] sm:$0xff]
  %v25 = vld [vmem:[%s0 + $0x28] sm:$0xff]
  %v26 = vld [vmem:[%s0 + $0x30] sm:$0xff]
  %v27 = vld [vmem:[%s0 + $0x38] sm:$0xff]
  %v28 = vld [vmem:[%s0 + $0x40] sm:$0xff]
  %v29 = vld [vmem:[%s0 + $0x48] sm:$0xff]
  %v30 = vld [vmem:[%s0 + $0x50] sm:$0xff]
  %v31 = vld [vmem:[%s0 + $0x58] sm:$0xff]
  %v32 = vld [vmem:[%s0 + $0x60] sm:$0xff]
  %v33 = vld [vmem:[%s0 + $0x68] sm:$0xff]
  %v34 = vld [vmem:[%s0 + $0x70] sm:$0xff]
  %v35 = vld [vmem:[%s0 + $0x78] sm:$0xff]
  %v36 = vld [vmem:[%s1] sm:$0xf]
  %v37 = vld [vmem:[%s2] sm:$0x1]
  %v39 = vlaneseq
  %v40 = vshrl.u32 %v39, 7
  %v41 = vsub.s32 0, %v40
  %v42 = vrot.slane %v37, %v41
  %vm44 = vcmask 31744
  %v46 = vsel %vm44, %v20, 0
  %v49 = vsel %vm44, %v21, 0
  %v52 = vsel %vm44, %v22, 0
  %v55 = vsel %vm44, %v23, 0
  %v58 = vsel %vm44, %v24, 0
  %v61 = vsel %vm44, %v25, 0
  %v64 = vsel %vm44, %v26, 0
  %v67 = vsel %vm44, %v27, 0
  %v70 = vsel %vm44, %v28, 0
  %v73 = vsel %vm44, %v29, 0
  %v76 = vsel %vm44, %v30, 0
  %v79 = vsel %vm44, %v31, 0
  %v82 = vsel %vm44, %v32, 0
  %v85 = vsel %vm44, %v33, 0
  %v88 = vsel %vm44, %v34, 0
  %v91 = vsel %vm44, %v35, 0
  %vm93 = vcmask 1043456
  %v95 = vsel %vm93, %v36, 0
  %97 = vmatprep.subr.mxu0 0.0
  %98 = vmatpush1.msra.mxu0 0.0
  %99 = vmatprep.subr.mxu0 0.0
  %100 = vmatpush1.msra.mxu0 0.0
  %101 = vmatprep.subr.mxu0 0.0
  %102 = vmatpush1.msra.mxu0 0.0
  %103 = vmatprep.subr.mxu0 0.0
  %104 = vmatpush1.msra.mxu0 0.0
  %105 = vmatprep.subr.mxu0 0.0
  %106 = vmatpush1.msra.mxu0 0.0
  %107 = vmatprep.subr.mxu0 0.0
  %108 = vmatpush1.msra.mxu0 0.0
  %109 = vmatprep.subr.mxu0 0.0
  %110 = vmatpush1.msra.mxu0 0.0
  %111 = vmatprep.subr.mxu0 0.0
  %112 = vmatpush1.msra.mxu0 0.0
  %113 = vmatprep.subr.mxu0 0.0
  %114 = vmatpush1.msra.mxu0 0.0
  %115 = vmatprep.subr.mxu0 0.0
  %116 = vmatpush1.msra.mxu0 0.0
  %117 = vmatprep.subr.mxu0 0.0
  %118 = vmatpush1.msra.mxu0 0.0
  %119 = vmatprep.subr.mxu0 0.0
  %120 = vmatpush1.msra.mxu0 0.0
  %121 = vmatprep.subr.mxu0 0.0
  %122 = vmatpush1.msra.mxu0 0.0
  %123 = vmatprep.subr.mxu0 0.0
  %124 = vmatpush1.msra.mxu0 0.0
  %125 = vmatprep.subr.mxu0 0.0
  %126 = vmatpush1.msra.mxu0 0.0
  %127 = vmatprep.subr.mxu0 0.0
  %128 = vmatpush1.msra.mxu0 %v95
  %129 = vmatprep.subr.mxu0 0.0
  %130 = vmatpush2.msra.mxu0 0.0
  %131 = vmatprep.subr.mxu0 0.0
  %132 = vmatpush2.msra.mxu0 0.0
  %133 = vmatprep.subr.mxu0 0.0
  %134 = vmatpush2.msra.mxu0 0.0
  %135 = vmatprep.subr.mxu0 0.0
  %136 = vmatpush2.msra.mxu0 0.0
  %137 = vmatprep.subr.mxu0 0.0
  %138 = vmatpush2.msra.mxu0 0.0
  %139 = vmatprep.subr.mxu0 0.0
  %140 = vmatpush2.msra.mxu0 0.0
  %141 = vmatprep.subr.mxu0 0.0
  %142 = vmatpush2.msra.mxu0 0.0
  %143 = vmatprep.subr.mxu0 0.0
  %144 = vmatpush2.msra.mxu0 0.0
  %145 = vmatprep.subr.mxu0 0.0
  %146 = vmatpush2.msra.mxu0 0.0
  %147 = vmatprep.subr.mxu0 0.0
  %148 = vmatpush2.msra.mxu0 0.0
  %149 = vmatprep.subr.mxu0 0.0
  %150 = vmatpush2.msra.mxu0 0.0
  %151 = vmatprep.subr.mxu0 0.0
  %152 = vmatpush2.msra.mxu0 0.0
  %153 = vmatprep.subr.mxu0 0.0
  %154 = vmatpush2.msra.mxu0 0.0
  %155 = vmatprep.subr.mxu0 0.0
  %156 = vmatpush2.msra.mxu0 0.0
  %157 = vmatprep.subr.mxu0 0.0
  %158 = vmatpush2.msra.mxu0 0.0
  %159 = vmatprep.subr.mxu0 0.0
  %160 = vmatpush2.msra.mxu0 0.0
  %161 = vmatprep.mubr.f32.mxu0 0.0
  %162 = vmatmul.mubr.f32.gmra.mxu0 %v46
  %v163 = vpop.f32.mrf.mxu0
  %v164 = vadd.f32 %v42, %v163
  %v165 = vpop.f32.mrf.mxu0
  %166 = vmatprep.mubr.f32.mxu0 0.0
  %167 = vmatmul.mubr.f32.gmra.mxu0 %v49
  %v168 = vpop.f32.mrf.mxu0
  %v169 = vadd.f32 %v42, %v168
  %v170 = vpop.f32.mrf.mxu0
  %171 = vmatprep.mubr.f32.mxu0 0.0
  %172 = vmatmul.mubr.f32.gmra.mxu0 %v52
  %v173 = vpop.f32.mrf.mxu0
  %v174 = vadd.f32 %v42, %v173
  %v175 = vpop.f32.mrf.mxu0
  %176 = vmatprep.mubr.f32.mxu0 0.0
  %177 = vmatmul.mubr.f32.gmra.mxu0 %v55
  %v178 = vpop.f32.mrf.mxu0
  %v179 = vadd.f32 %v42, %v178
  %v180 = vpop.f32.mrf.mxu0
  %181 = vmatprep.mubr.f32.mxu0 0.0
  %182 = vmatmul.mubr.f32.gmra.mxu0 %v58
  %v183 = vpop.f32.mrf.mxu0
  %v184 = vadd.f32 %v42, %v183
  %v185 = vpop.f32.mrf.mxu0
  %186 = vmatprep.mubr.f32.mxu0 0.0
  %187 = vmatmul.mubr.f32.gmra.mxu0 %v61
  %v188 = vpop.f32.mrf.mxu0
  %v189 = vadd.f32 %v42, %v188
  %v190 = vpop.f32.mrf.mxu0
  %191 = vmatprep.mubr.f32.mxu0 0.0
  %192 = vmatmul.mubr.f32.gmra.mxu0 %v64
  %v193 = vpop.f32.mrf.mxu0
  %v194 = vadd.f32 %v42, %v193
  %v195 = vpop.f32.mrf.mxu0
  %196 = vmatprep.mubr.f32.mxu0 0.0
  %197 = vmatmul.mubr.f32.gmra.mxu0 %v67
  %v198 = vpop.f32.mrf.mxu0
  %v199 = vadd.f32 %v42, %v198
  %v200 = vpop.f32.mrf.mxu0
  %201 = vmatprep.mubr.f32.mxu0 0.0
  %202 = vmatmul.mubr.f32.gmra.mxu0 %v70
  %v203 = vpop.f32.mrf.mxu0
  %v204 = vadd.f32 %v42, %v203
  %v205 = vpop.f32.mrf.mxu0
  %206 = vmatprep.mubr.f32.mxu0 0.0
  %207 = vmatmul.mubr.f32.gmra.mxu0 %v73
  %v208 = vpop.f32.mrf.mxu0
  %v209 = vadd.f32 %v42, %v208
  %v210 = vpop.f32.mrf.mxu0
  %211 = vmatprep.mubr.f32.mxu0 0.0
  %212 = vmatmul.mubr.f32.gmra.mxu0 %v76
  %v213 = vpop.f32.mrf.mxu0
  %v214 = vadd.f32 %v42, %v213
  %v215 = vpop.f32.mrf.mxu0
  %216 = vmatprep.mubr.f32.mxu0 0.0
  %217 = vmatmul.mubr.f32.gmra.mxu0 %v79
  %v218 = vpop.f32.mrf.mxu0
  %v219 = vadd.f32 %v42, %v218
  %v220 = vpop.f32.mrf.mxu0
  %221 = vmatprep.mubr.f32.mxu0 0.0
  %222 = vmatmul.mubr.f32.gmra.mxu0 %v82
  %v223 = vpop.f32.mrf.mxu0
  %v224 = vadd.f32 %v42, %v223
  %v225 = vpop.f32.mrf.mxu0
  %226 = vmatprep.mubr.f32.mxu0 0.0
  %227 = vmatmul.mubr.f32.gmra.mxu0 %v85
  %v228 = vpop.f32.mrf.mxu0
  %v229 = vadd.f32 %v42, %v228
  %v230 = vpop.f32.mrf.mxu0
  %231 = vmatprep.mubr.f32.mxu0 0.0
  %232 = vmatmul.mubr.f32.gmra.mxu0 %v88
  %v233 = vpop.f32.mrf.mxu0
  %v234 = vadd.f32 %v42, %v233
  %v235 = vpop.f32.mrf.mxu0
  %236 = vmatprep.mubr.f32.mxu0 0.0
  %237 = vmatmul.mubr.f32.gmra.mxu0 %v91
  %v238 = vpop.f32.mrf.mxu0
  %v239 = vadd.f32 %v42, %v238
  %v240 = vpop.f32.mrf.mxu0
  %241 = vdwg.mxu0
  %v242 = vmax.f32 %v164, 0.0
  %v243 = vmax.f32 %v169, 0.0
  %v244 = vmax.f32 %v174, 0.0
  %v245 = vmax.f32 %v179, 0.0
  %v246 = vmax.f32 %v184, 0.0
  %v247 = vmax.f32 %v189, 0.0
  %v248 = vmax.f32 %v194, 0.0
  %v249 = vmax.f32 %v199, 0.0
  %v250 = vmax.f32 %v204, 0.0
  %v251 = vmax.f32 %v209, 0.0
  %v252 = vmax.f32 %v214, 0.0
  %v253 = vmax.f32 %v219, 0.0
  %v254 = vmax.f32 %v224, 0.0
  %v255 = vmax.f32 %v229, 0.0
  %v256 = vmax.f32 %v234, 0.0
  %v257 = vmax.f32 %v239, 0.0
  %v258 = vld [vmem:[%s3] sm:$0xff]
  %v259 = vld [vmem:[%s3 + $0x8] sm:$0xff]
  %v260 = vld [vmem:[%s3 + $0x10] sm:$0xff]
  %v261 = vld [vmem:[%s3 + $0x18] sm:$0xff]
  %v262 = vld [vmem:[%s4] sm:$0x1]
  %v264 = vlaneseq
  %v265 = vshrl.u32 %v264, 7
  %v266 = vsub.s32 0, %v265
  %v267 = vrot.slane %v262, %v266
  %vm269 = vcmask 261120
  %v271 = vsel %vm269, %v242, 0
  %v274 = vsel %vm269, %v243, 0
  %v277 = vsel %vm269, %v244, 0
  %v280 = vsel %vm269, %v245, 0
  %v283 = vsel %vm269, %v246, 0
  %v286 = vsel %vm269, %v247, 0
  %v289 = vsel %vm269, %v248, 0
  %v292 = vsel %vm269, %v249, 0
  %v295 = vsel %vm269, %v250, 0
  %v298 = vsel %vm269, %v251, 0
  %v301 = vsel %vm269, %v252, 0
  %v304 = vsel %vm269, %v253, 0
  %v307 = vsel %vm269, %v254, 0
  %v310 = vsel %vm269, %v255, 0
  %v313 = vsel %vm269, %v256, 0
  %v316 = vsel %vm269, %v257, 0
  %318 = vmatprep.subr.mxu0 0.0
  %319 = vmatpush1.msra.mxu0 0.0
  %320 = vmatprep.subr.mxu0 0.0
  %321 = vmatpush1.msra.mxu0 0.0
  %322 = vmatprep.subr.mxu0 0.0
  %323 = vmatpush1.msra.mxu0 0.0
  %324 = vmatprep.subr.mxu0 0.0
  %325 = vmatpush1.msra.mxu0 0.0
  %326 = vmatprep.subr.mxu0 0.0
  %327 = vmatpush1.msra.mxu0 0.0
  %328 = vmatprep.subr.mxu0 0.0
  %329 = vmatpush1.msra.mxu0 0.0
  %330 = vmatprep.subr.mxu0 0.0
  %331 = vmatpush1.msra.mxu0 0.0
  %332 = vmatprep.subr.mxu0 0.0
  %333 = vmatpush1.msra.mxu0 0.0
  %334 = vmatprep.subr.mxu0 0.0
  %335 = vmatpush1.msra.mxu0 0.0
  %336 = vmatprep.subr.mxu0 0.0
  %337 = vmatpush1.msra.mxu0 0.0
  %338 = vmatprep.subr.mxu0 0.0
  %339 = vmatpush1.msra.mxu0 0.0
  %340 = vmatprep.subr.mxu0 0.0
  %341 = vmatpush1.msra.mxu0 0.0
  %342 = vmatprep.subr.mxu0 0.0
  %343 = vmatpush1.msra.mxu0 %v261
  %344 = vmatprep.subr.mxu0 0.0
  %345 = vmatpush1.msra.mxu0 %v260
  %346 = vmatprep.subr.mxu0 0.0
  %347 = vmatpush1.msra.mxu0 %v259
  %348 = vmatprep.subr.mxu0 0.0
  %349 = vmatpush1.msra.mxu0 %v258
  %350 = vmatprep.subr.mxu0 0.0
  %351 = vmatpush2.msra.mxu0 0.0
  %352 = vmatprep.subr.mxu0 0.0
  %353 = vmatpush2.msra.mxu0 0.0
  %354 = vmatprep.subr.mxu0 0.0
  %355 = vmatpush2.msra.mxu0 0.0
  %356 = vmatprep.subr.mxu0 0.0
  %357 = vmatpush2.msra.mxu0 0.0
  %358 = vmatprep.subr.mxu0 0.0
  %359 = vmatpush2.msra.mxu0 0.0
  %360 = vmatprep.subr.mxu0 0.0
  %361 = vmatpush2.msra.mxu0 0.0
  %362 = vmatprep.subr.mxu0 0.0
  %363 = vmatpush2.msra.mxu0 0.0
  %364 = vmatprep.subr.mxu0 0.0
  %365 = vmatpush2.msra.mxu0 0.0
  %366 = vmatprep.subr.mxu0 0.0
  %367 = vmatpush2.msra.mxu0 0.0
  %368 = vmatprep.subr.mxu0 0.0
  %369 = vmatpush2.msra.mxu0 0.0
  %370 = vmatprep.subr.mxu0 0.0
  %371 = vmatpush2.msra.mxu0 0.0
  %372 = vmatprep.subr.mxu0 0.0
  %373 = vmatpush2.msra.mxu0 0.0
  %374 = vmatprep.subr.mxu0 0.0
  %375 = vmatpush2.msra.mxu0 0.0
  %376 = vmatprep.subr.mxu0 0.0
  %377 = vmatpush2.msra.mxu0 0.0
  %378 = vmatprep.subr.mxu0 0.0
  %379 = vmatpush2.msra.mxu0 0.0
  %380 = vmatprep.subr.mxu0 0.0
  %381 = vmatpush2.msra.mxu0 0.0
  %382 = vmatprep.mubr.f32.mxu0 0.0
  %383 = vmatmul.mubr.f32.gmra.mxu0 %v271
  %v384 = vpop.f32.mrf.mxu0
  %v385 = vadd.f32 %v267, %v384
  %v386 = vpop.f32.mrf.mxu0
  %387 = vmatprep.mubr.f32.mxu0 0.0
  %388 = vmatmul.mubr.f32.gmra.mxu0 %v274
  %v389 = vpop.f32.mrf.mxu0
  %v390 = vadd.f32 %v267, %v389
  %v391 = vpop.f32.mrf.mxu0
  %392 = vmatprep.mubr.f32.mxu0 0.0
  %393 = vmatmul.mubr.f32.gmra.mxu0 %v277
  %v394 = vpop.f32.mrf.mxu0
  %v395 = vadd.f32 %v267, %v394
  %v396 = vpop.f32.mrf.mxu0
  %397 = vmatprep.mubr.f32.mxu0 0.0
  %398 = vmatmul.mubr.f32.gmra.mxu0 %v280
  %v399 = vpop.f32.mrf.mxu0
  %v400 = vadd.f32 %v267, %v399
  %v401 = vpop.f32.mrf.mxu0
  %402 = vmatprep.mubr.f32.mxu0 0.0
  %403 = vmatmul.mubr.f32.gmra.mxu0 %v283
  %v404 = vpop.f32.mrf.mxu0
  %v405 = vadd.f32 %v267, %v404
  %v406 = vpop.f32.mrf.mxu0
  %407 = vmatprep.mubr.f32.mxu0 0.0
  %408 = vmatmul.mubr.f32.gmra.mxu0 %v286
  %v409 = vpop.f32.mrf.mxu0
  %v410 = vadd.f32 %v267, %v409
  %v411 = vpop.f32.mrf.mxu0
  %412 = vmatprep.mubr.f32.mxu0 0.0
  %413 = vmatmul.mubr.f32.gmra.mxu0 %v289
  %v414 = vpop.f32.mrf.mxu0
  %v415 = vadd.f32 %v267, %v414
  %v416 = vpop.f32.mrf.mxu0
  %417 = vmatprep.mubr.f32.mxu0 0.0
  %418 = vmatmul.mubr.f32.gmra.mxu0 %v292
  %v419 = vpop.f32.mrf.mxu0
  %v420 = vadd.f32 %v267, %v419
  %v421 = vpop.f32.mrf.mxu0
  %422 = vmatprep.mubr.f32.mxu0 0.0
  %423 = vmatmul.mubr.f32.gmra.mxu0 %v295
  %v424 = vpop.f32.mrf.mxu0
  %v425 = vadd.f32 %v267, %v424
  %v426 = vpop.f32.mrf.mxu0
  %427 = vmatprep.mubr.f32.mxu0 0.0
  %428 = vmatmul.mubr.f32.gmra.mxu0 %v298
  %v429 = vpop.f32.mrf.mxu0
  %v430 = vadd.f32 %v267, %v429
  %v431 = vpop.f32.mrf.mxu0
  %432 = vmatprep.mubr.f32.mxu0 0.0
  %433 = vmatmul.mubr.f32.gmra.mxu0 %v301
  %v434 = vpop.f32.mrf.mxu0
  %v435 = vadd.f32 %v267, %v434
  %v436 = vpop.f32.mrf.mxu0
  %437 = vmatprep.mubr.f32.mxu0 0.0
  %438 = vmatmul.mubr.f32.gmra.mxu0 %v304
  %v439 = vpop.f32.mrf.mxu0
  %v440 = vadd.f32 %v267, %v439
  %v441 = vpop.f32.mrf.mxu0
  %442 = vmatprep.mubr.f32.mxu0 0.0
  %443 = vmatmul.mubr.f32.gmra.mxu0 %v307
  %v444 = vpop.f32.mrf.mxu0
  %v445 = vadd.f32 %v267, %v444
  %v446 = vpop.f32.mrf.mxu0
  %447 = vmatprep.mubr.f32.mxu0 0.0
  %448 = vmatmul.mubr.f32.gmra.mxu0 %v310
  %v449 = vpop.f32.mrf.mxu0
  %v450 = vadd.f32 %v267, %v449
  %v451 = vpop.f32.mrf.mxu0
  %452 = vmatprep.mubr.f32.mxu0 0.0
  %453 = vmatmul.mubr.f32.gmra.mxu0 %v313
  %v454 = vpop.f32.mrf.mxu0
  %v455 = vadd.f32 %v267, %v454
  %v456 = vpop.f32.mrf.mxu0
  %457 = vmatprep.mubr.f32.mxu0 0.0
  %458 = vmatmul.mubr.f32.gmra.mxu0 %v316
  %v459 = vpop.f32.mrf.mxu0
  %v460 = vadd.f32 %v267, %v459
  %v461 = vpop.f32.mrf.mxu0
  %462 = vdwg.mxu0
  %v463 = vmul.f32 %v385, %v385
  %v464 = vmul.f32 %v390, %v390
  %v465 = vmul.f32 %v395, %v395
  %v466 = vmul.f32 %v400, %v400
  %v467 = vmul.f32 %v405, %v405
  %v468 = vmul.f32 %v410, %v410
  %v469 = vmul.f32 %v415, %v415
  %v470 = vmul.f32 %v420, %v420
  %v471 = vmul.f32 %v425, %v425
  %v472 = vmul.f32 %v430, %v430
  %v473 = vmul.f32 %v435, %v435
  %v474 = vmul.f32 %v440, %v440
  %v475 = vmul.f32 %v445, %v445
  %v476 = vmul.f32 %v450, %v450
  %v477 = vmul.f32 %v455, %v455
  %v478 = vmul.f32 %v460, %v460
  %v479 = vsel %vm269, %v463, 0.0
  %480 = vadd.xlane.f32.xlu0 %v479
  %v481 = vpop.xlane.xlu0 %480
  %v482 = vsel %vm269, %v464, 0.0
  %483 = vadd.xlane.f32.xlu0 %v482
  %v484 = vpop.xlane.xlu0 %483
  %v485 = vsel %vm269, %v465, 0.0
  %486 = vadd.xlane.f32.xlu0 %v485
  %v487 = vpop.xlane.xlu0 %486
  %v488 = vsel %vm269, %v466, 0.0
  %489 = vadd.xlane.f32.xlu0 %v488
  %v490 = vpop.xlane.xlu0 %489
  %v491 = vsel %vm269, %v467, 0.0
  %492 = vadd.xlane.f32.xlu0 %v491
  %v493 = vpop.xlane.xlu0 %492
  %v494 = vsel %vm269, %v468, 0.0
  %495 = vadd.xlane.f32.xlu0 %v494
  %v496 = vpop.xlane.xlu0 %495
  %v497 = vsel %vm269, %v469, 0.0
  %498 = vadd.xlane.f32.xlu0 %v497
  %v499 = vpop.xlane.xlu0 %498
  %v500 = vsel %vm269, %v470, 0.0
  %501 = vadd.xlane.f32.xlu0 %v500
  %v502 = vpop.xlane.xlu0 %501
  %v503 = vsel %vm269, %v471, 0.0
  %504 = vadd.xlane.f32.xlu0 %v503
  %v505 = vpop.xlane.xlu0 %504
  %v506 = vsel %vm269, %v472, 0.0
  %507 = vadd.xlane.f32.xlu0 %v506
  %v508 = vpop.xlane.xlu0 %507
  %v509 = vsel %vm269, %v473, 0.0
  %510 = vadd.xlane.f32.xlu0 %v509
  %v511 = vpop.xlane.xlu0 %510
  %v512 = vsel %vm269, %v474, 0.0
  %513 = vadd.xlane.f32.xlu0 %v512
  %v514 = vpop.xlane.xlu0 %513
  %v515 = vsel %vm269, %v475, 0.0
  %516 = vadd.xlane.f32.xlu0 %v515
  %v517 = vpop.xlane.xlu0 %516
  %v518 = vsel %vm269, %v476, 0.0
  %519 = vadd.xlane.f32.xlu0 %v518
  %v520 = vpop.xlane.xlu0 %519
  %v521 = vsel %vm269, %v477, 0.0
  %522 = vadd.xlane.f32.xlu0 %v521
  %v523 = vpop.xlane.xlu0 %522
  %v524 = vsel %vm269, %v478, 0.0
  %525 = vadd.xlane.f32.xlu0 %v524
  %v526 = vpop.xlane.xlu0 %525
  %v527 = vrsqrt.pop %v481
  %v528 = vmul.f32 %v481, %v527
  %vm529 = vcmp.eq.f32.partialorder %v481, inf
  %v530 = vsel %vm529, %v481, %v528
  %vm531 = vcmp.eq.f32.partialorder %v481, 0.0
  %v532 = vand.u32 %v481, 2147483648
  %v533 = vsel %vm531, %v532, %v530
  %v534 = vrsqrt.pop %v484
  %v535 = vmul.f32 %v484, %v534
  %vm536 = vcmp.eq.f32.partialorder %v484, inf
  %v537 = vsel %vm536, %v484, %v535
  %vm538 = vcmp.eq.f32.partialorder %v484, 0.0
  %v539 = vand.u32 %v484, 2147483648
  %v540 = vsel %vm538, %v539, %v537
  %v541 = vrsqrt.pop %v487
  %v542 = vmul.f32 %v487, %v541
  %vm543 = vcmp.eq.f32.partialorder %v487, inf
  %v544 = vsel %vm543, %v487, %v542
  %vm545 = vcmp.eq.f32.partialorder %v487, 0.0
  %v546 = vand.u32 %v487, 2147483648
  %v547 = vsel %vm545, %v546, %v544
  %v548 = vrsqrt.pop %v490
  %v549 = vmul.f32 %v490, %v548
  %vm550 = vcmp.eq.f32.partialorder %v490, inf
  %v551 = vsel %vm550, %v490, %v549
  %vm552 = vcmp.eq.f32.partialorder %v490, 0.0
  %v553 = vand.u32 %v490, 2147483648
  %v554 = vsel %vm552, %v553, %v551
  %v555 = vrsqrt.pop %v493
  %v556 = vmul.f32 %v493, %v555
  %vm557 = vcmp.eq.f32.partialorder %v493, inf
  %v558 = vsel %vm557, %v493, %v556
  %vm559 = vcmp.eq.f32.partialorder %v493, 0.0
  %v560 = vand.u32 %v493, 2147483648
  %v561 = vsel %vm559, %v560, %v558
  %v562 = vrsqrt.pop %v496
  %v563 = vmul.f32 %v496, %v562
  %vm564 = vcmp.eq.f32.partialorder %v496, inf
  %v565 = vsel %vm564, %v496, %v563
  %vm566 = vcmp.eq.f32.partialorder %v496, 0.0
  %v567 = vand.u32 %v496, 2147483648
  %v568 = vsel %vm566, %v567, %v565
  %v569 = vrsqrt.pop %v499
  %v570 = vmul.f32 %v499, %v569
  %vm571 = vcmp.eq.f32.partialorder %v499, inf
  %v572 = vsel %vm571, %v499, %v570
  %vm573 = vcmp.eq.f32.partialorder %v499, 0.0
  %v574 = vand.u32 %v499, 2147483648
  %v575 = vsel %vm573, %v574, %v572
  %v576 = vrsqrt.pop %v502
  %v577 = vmul.f32 %v502, %v576
  %vm578 = vcmp.eq.f32.partialorder %v502, inf
  %v579 = vsel %vm578, %v502, %v577
  %vm580 = vcmp.eq.f32.partialorder %v502, 0.0
  %v581 = vand.u32 %v502, 2147483648
  %v582 = vsel %vm580, %v581, %v579
  %v583 = vrsqrt.pop %v505
  %v584 = vmul.f32 %v505, %v583
  %vm585 = vcmp.eq.f32.partialorder %v505, inf
  %v586 = vsel %vm585, %v505, %v584
  %vm587 = vcmp.eq.f32.partialorder %v505, 0.0
  %v588 = vand.u32 %v505, 2147483648
  %v589 = vsel %vm587, %v588, %v586
  %v590 = vrsqrt.pop %v508
  %v591 = vmul.f32 %v508, %v590
  %vm592 = vcmp.eq.f32.partialorder %v508, inf
  %v593 = vsel %vm592, %v508, %v591
  %vm594 = vcmp.eq.f32.partialorder %v508, 0.0
  %v595 = vand.u32 %v508, 2147483648
  %v596 = vsel %vm594, %v595, %v593
  %v597 = vrsqrt.pop %v511
  %v598 = vmul.f32 %v511, %v597
  %vm599 = vcmp.eq.f32.partialorder %v511, inf
  %v600 = vsel %vm599, %v511, %v598
  %vm601 = vcmp.eq.f32.partialorder %v511, 0.0
  %v602 = vand.u32 %v511, 2147483648
  %v603 = vsel %vm601, %v602, %v600
  %v604 = vrsqrt.pop %v514
  %v605 = vmul.f32 %v514, %v604
  %vm606 = vcmp.eq.f32.partialorder %v514, inf
  %v607 = vsel %vm606, %v514, %v605
  %vm608 = vcmp.eq.f32.partialorder %v514, 0.0
  %v609 = vand.u32 %v514, 2147483648
  %v610 = vsel %vm608, %v609, %v607
  %v611 = vrsqrt.pop %v517
  %v612 = vmul.f32 %v517, %v611
  %vm613 = vcmp.eq.f32.partialorder %v517, inf
  %v614 = vsel %vm613, %v517, %v612
  %vm615 = vcmp.eq.f32.partialorder %v517, 0.0
  %v616 = vand.u32 %v517, 2147483648
  %v617 = vsel %vm615, %v616, %v614
  %v618 = vrsqrt.pop %v520
  %v619 = vmul.f32 %v520, %v618
  %vm620 = vcmp.eq.f32.partialorder %v520, inf
  %v621 = vsel %vm620, %v520, %v619
  %vm622 = vcmp.eq.f32.partialorder %v520, 0.0
  %v623 = vand.u32 %v520, 2147483648
  %v624 = vsel %vm622, %v623, %v621
  %v625 = vrsqrt.pop %v523
  %v626 = vmul.f32 %v523, %v625
  %vm627 = vcmp.eq.f32.partialorder %v523, inf
  %v628 = vsel %vm627, %v523, %v626
  %vm629 = vcmp.eq.f32.partialorder %v523, 0.0
  %v630 = vand.u32 %v523, 2147483648
  %v631 = vsel %vm629, %v630, %v628
  %v632 = vrsqrt.pop %v526
  %v633 = vmul.f32 %v526, %v632
  %vm634 = vcmp.eq.f32.partialorder %v526, inf
  %v635 = vsel %vm634, %v526, %v633
  %vm636 = vcmp.eq.f32.partialorder %v526, 0.0
  %v637 = vand.u32 %v526, 2147483648
  %v638 = vsel %vm636, %v637, %v635
  %v639 = vadd.f32 %v533, 1e-07
  %v640 = vadd.f32 %v540, 1e-07
  %v641 = vadd.f32 %v547, 1e-07
  %v642 = vadd.f32 %v554, 1e-07
  %v643 = vadd.f32 %v561, 1e-07
  %v644 = vadd.f32 %v568, 1e-07
  %v645 = vadd.f32 %v575, 1e-07
  %v646 = vadd.f32 %v582, 1e-07
  %v647 = vadd.f32 %v589, 1e-07
  %v648 = vadd.f32 %v596, 1e-07
  %v649 = vadd.f32 %v603, 1e-07
  %v650 = vadd.f32 %v610, 1e-07
  %v651 = vadd.f32 %v617, 1e-07
  %v652 = vadd.f32 %v624, 1e-07
  %v653 = vadd.f32 %v631, 1e-07
  %v654 = vadd.f32 %v638, 1e-07
  %v655 = vrcp.pop %v639
  %v656 = vmul.f32 1.0, %v655
  %v657 = vrcp.pop %v640
  %v658 = vmul.f32 1.0, %v657
  %v659 = vrcp.pop %v641
  %v660 = vmul.f32 1.0, %v659
  %v661 = vrcp.pop %v642
  %v662 = vmul.f32 1.0, %v661
  %v663 = vrcp.pop %v643
  %v664 = vmul.f32 1.0, %v663
  %v665 = vrcp.pop %v644
  %v666 = vmul.f32 1.0, %v665
  %v667 = vrcp.pop %v645
  %v668 = vmul.f32 1.0, %v667
  %v669 = vrcp.pop %v646
  %v670 = vmul.f32 1.0, %v669
  %v671 = vrcp.pop %v647
  %v672 = vmul.f32 1.0, %v671
  %v673 = vrcp.pop %v648
  %v674 = vmul.f32 1.0, %v673
  %v675 = vrcp.pop %v649
  %v676 = vmul.f32 1.0, %v675
  %v677 = vrcp.pop %v650
  %v678 = vmul.f32 1.0, %v677
  %v679 = vrcp.pop %v651
  %v680 = vmul.f32 1.0, %v679
  %v681 = vrcp.pop %v652
  %v682 = vmul.f32 1.0, %v681
  %v683 = vrcp.pop %v653
  %v684 = vmul.f32 1.0, %v683
  %v685 = vrcp.pop %v654
  %v686 = vmul.f32 1.0, %v685
  %v687 = vmul.f32 %v385, %v656
  %v688 = vmul.f32 %v390, %v658
  %v689 = vmul.f32 %v395, %v660
  %v690 = vmul.f32 %v400, %v662
  %v691 = vmul.f32 %v405, %v664
  %v692 = vmul.f32 %v410, %v666
  %v693 = vmul.f32 %v415, %v668
  %v694 = vmul.f32 %v420, %v670
  %v695 = vmul.f32 %v425, %v672
  %v696 = vmul.f32 %v430, %v674
  %v697 = vmul.f32 %v435, %v676
  %v698 = vmul.f32 %v440, %v678
  %v699 = vmul.f32 %v445, %v680
  %v700 = vmul.f32 %v450, %v682
  %v701 = vmul.f32 %v455, %v684
  %v702 = vmul.f32 %v460, %v686
  %703 = vst.msk [vmem:[%s5] sm:$0xff] %vm269, %v687
  %704 = vst.msk [vmem:[%s5 + $0x8] sm:$0xff] %vm269, %v688
  %705 = vst.msk [vmem:[%s5 + $0x10] sm:$0xff] %vm269, %v689
  %706 = vst.msk [vmem:[%s5 + $0x18] sm:$0xff] %vm269, %v690
  %707 = vst.msk [vmem:[%s5 + $0x20] sm:$0xff] %vm269, %v691
  %708 = vst.msk [vmem:[%s5 + $0x28] sm:$0xff] %vm269, %v692
  %709 = vst.msk [vmem:[%s5 + $0x30] sm:$0xff] %vm269, %v693
  %710 = vst.msk [vmem:[%s5 + $0x38] sm:$0xff] %vm269, %v694
  %711 = vst.msk [vmem:[%s5 + $0x40] sm:$0xff] %vm269, %v695
  %712 = vst.msk [vmem:[%s5 + $0x48] sm:$0xff] %vm269, %v696
  %713 = vst.msk [vmem:[%s5 + $0x50] sm:$0xff] %vm269, %v697
  %714 = vst.msk [vmem:[%s5 + $0x58] sm:$0xff] %vm269, %v698
  %715 = vst.msk [vmem:[%s5 + $0x60] sm:$0xff] %vm269, %v699
  %716 = vst.msk [vmem:[%s5 + $0x68] sm:$0xff] %vm269, %v700
  %717 = vst.msk [vmem:[%s5 + $0x70] sm:$0xff] %vm269, %v701
  %718 = vst.msk [vmem:[%s5 + $0x78] sm:$0xff] %vm269, %v702
  // Predicated region
  $region22: #{_sample_level.1} parent=0 // pred_check
    _
  $region23: #{_sample_level.1} parent=0 // pred_check_branch
    %720 = sbr.rel (0) target = $region25
  $region24: #{_sample_level.1} parent=0 // pred_region
    _
  $region25: #{_sample_level.1} parent=0 // pred_fallthru
    _
  // Predicated region
  $region26: #{_sample_level.1} parent=0 // pred_check
    _
  $region27: #{_sample_level.1} parent=0 // pred_check_branch
    %722 = sbr.rel (0) target = $region29
  $region28: #{_sample_level.1} parent=0 // pred_region
    _
  $region29: #{_sample_level.1} parent=0 // pred_fallthru
    _

</llo_original>
